<compile_context>
chip_gen: v6e
topology: v6e:2x2x1
jax: 0.10.0
libtpu: 0.0.40
codegen_flags: <defaults>
</compile_context>

<pallas_src>
import math
import numpy as np

import jax
import jax.numpy as jnp
from jax.experimental import pallas as pl
from jax.experimental.pallas import tpu as pltpu


# -------------------- deterministic parameter init (mirrors __init__) -------
def _to_mel(hz):
    return 2595 * np.log10(1 + hz / 700)


def _to_hz(mel):
    return 700 * (10 ** (mel / 2595) - 1)


def init_sinc_params(out_channels, kernel_size, sample_rate=16000,
                     min_low_hz=0, min_band_hz=0, filter_type='s1'):
    if kernel_size % 2 == 0:
        kernel_size = kernel_size + 1  # force odd, same as the module

    low_hz = 30
    high_hz = sample_rate / 2 - (min_low_hz + min_band_hz)
    if filter_type == 's1':
        mel = np.linspace(_to_mel(low_hz), _to_mel(high_hz), out_channels + 1)
    else:
        mel = np.linspace(_to_mel(high_hz), _to_mel(low_hz), out_channels + 1)
    hz = _to_hz(mel)

    low_hz_ = hz[:-1].reshape(-1, 1).astype(np.float32)        # (C, 1)
    band_hz_ = np.diff(hz).reshape(-1, 1).astype(np.float32)   # (C, 1)

    half = int(kernel_size / 2)
    n_lin = np.linspace(0.0, kernel_size / 2 - 1, half).astype(np.float32)
    window_ = (0.54 - 0.46 * np.cos(2 * math.pi * n_lin / kernel_size)
               ).astype(np.float32)                            # (half,)
    n = (kernel_size - 1) / 2.0
    n_ = (2 * math.pi * np.arange(-n, 0.0, dtype=np.float32).reshape(1, -1)
          / sample_rate).astype(np.float32)                    # (1, half)

    return dict(
        kernel_size=kernel_size,
        sample_rate=sample_rate,
        min_low_hz=min_low_hz,
        min_band_hz=min_band_hz,
        low_hz_=jnp.asarray(low_hz_),
        band_hz_=jnp.asarray(band_hz_),
        window_=jnp.asarray(window_),
        n_=jnp.asarray(n_),
    )


# -------------------- filter construction (glue, matches forward()) ---------
def compute_sinc_filters(p):
    low = p['min_low_hz'] + jnp.abs(p['low_hz_'])                       # (C,1)
    high = jnp.clip(low + p['min_band_hz'] + jnp.abs(p['band_hz_']),
                    p['min_low_hz'], p['sample_rate'] / 2)              # (C,1)
    band = (high - low)[:, 0]                                           # (C,)

    f_times_t_low = jnp.matmul(low, p['n_'])                            # (C,half)
    f_times_t_high = jnp.matmul(high, p['n_'])                          # (C,half)

    band_pass_left = ((jnp.sin(f_times_t_high) - jnp.sin(f_times_t_low))
                      / (p['n_'] / 2)) * p['window_']                   # (C,half)
    band_pass_center = 2 * band[:, None]                                # (C,1)
    band_pass_right = jnp.flip(band_pass_left, axis=1)                  # (C,half)

    band_pass = jnp.concatenate(
        [band_pass_left, band_pass_center, band_pass_right], axis=1)    # (C,K)
    band_pass = band_pass / (2 * band[:, None])
    return band_pass.astype(jnp.float32)                                # (C,K)


# -------------------- strided-roll direction calibration --------------------
# pltpu.roll(win8, shift, axis=-1, stride=1, stride_axis=0) produces 8 lane
# rotations (one per sublane).  We probe once (per window width) whether a
# positive shift moves data toward higher lanes ("A", jnp.roll convention:
# out[i] = x[i - shift]) or toward lower lanes ("B": out[i] = x[i + shift]).
_ROLL_MODE_CACHE = {}


def _strided_roll_mode(width):
    if width in _ROLL_MODE_CACHE:
        return _ROLL_MODE_CACHE[width]
    shift0 = 5
    mode = "none"
    try:
        def _probe(x_ref, o_ref):
            o_ref[...] = pltpu.roll(x_ref[...], shift0, axis=1,
                                    stride=1, stride_axis=0)

        x = jnp.broadcast_to(jnp.arange(width, dtype=jnp.float32)[None, :],
                             (8, width))
        out = pl.pallas_call(
            _probe,
            out_shape=jax.ShapeDtypeStruct((8, width), jnp.float32))(x)
        out = np.asarray(jax.device_get(out)).astype(np.int64)
        # displacement d_r per sublane r: out[r, i] == x[r, (i - d_r) % width]
        d = (-out[:, 0]) % width
        rows = np.arange(8)
        if np.all(d == (shift0 + rows) % width):
            mode = "A"
        elif np.all(d == (-(shift0 + rows)) % width):
            mode = "B"
        _ROLL_MODE_CACHE[width] = mode
    except Exception:
        mode = "none"   # lowering / concretization problem -> safe fallback
    return mode


# -------------------- Pallas conv1d kernel (the hot path) -------------------
def _round_up(x, m):
    return ((x + m - 1) // m) * m


def sinc_conv1d_pallas(x, filters, tile_l=1024, use_bf16=False):
    """x: (B, 1, n_samples) f32, filters: (C, K) f32 -> (B, C, n_samples-K+1)."""
    B, in_ch, n_samples = x.shape
    assert in_ch == 1, "SincConv only supports one input channel"
    C, K = filters.shape
    L_out = n_samples - K + 1
    assert L_out > 0, "n_samples must be >= kernel_size"

    # ---- padding / tiling geometry ------------------------------------------
    TILE_L = _round_up(min(tile_l, _round_up(L_out, 128)), 128)
    L_out_pad = _round_up(L_out, TILE_L)
    num_l = L_out_pad // TILE_L
    C_pad = _round_up(C, 8)                     # f32 sublane multiple
    n_groups = -(-K // 8)                       # ceil(K / 8)
    K_rows = 8 * n_groups                       # patch rows (taps 1..K_rows)
    W = _round_up(TILE_L + K_rows, 128)         # per-tile window width
    n_samples_pad = L_out_pad - TILE_L + W      # multiple of 128
    assert n_samples_pad >= n_samples + 1       # room for 1 front zero + data

    # One leading zero so that window[l + t] == x[base + l + (t - 1)]: taps
    # t = 1..K_rows, all roll shifts strictly inside (0, W), base 128-aligned.
    x_p = jnp.zeros((B, 1, n_samples_pad), jnp.float32)
    x_p = x_p.at[:, :, 1:1 + n_samples].set(x.astype(jnp.float32))

    # ---- roll convention + filter column permutation ------------------------
    mode = _strided_roll_mode(W)
    if mode == "A":       # out[l] = win[l - shift]  -> tap = W - shift
        shift_bases = [W - 8 * g - 8 for g in range(n_groups)]
        k_of_row = np.array([8 * (j // 8) + 7 - (j % 8) for j in range(K_rows)],
                            dtype=np.int32)
    elif mode == "B":     # out[l] = win[l + shift]  -> tap = shift
        shift_bases = [8 * g + 1 for g in range(n_groups)]
        k_of_row = np.arange(K_rows, dtype=np.int32)
    else:                 # fallback: per-row build, identity mapping
        shift_bases = None
        k_of_row = np.arange(K_rows, dtype=np.int32)

    f_pad = jnp.zeros((C_pad, K_rows), jnp.float32)
    f_pad = f_pad.at[:C, :K].set(filters.astype(jnp.float32))
    f_rows = f_pad[:, k_of_row]                 # column j multiplies patch row j
    f_in = f_rows.astype(jnp.bfloat16) if use_bf16 else f_rows

    # ---- kernel body ---------------------------------------------------------
    def conv_kernel(x_ref, f_ref, o_ref, p_ref):
        # x_ref: (1, 1, n_samples_pad) whole waveform (VMEM-resident per batch)
        # f_ref: (C_pad, K_rows) permuted filters
        # o_ref: (1, C_pad, TILE_L) lane-dense output tile
        # p_ref: (K_rows, TILE_L) f32 im2col patch scratch
        tile_idx = pl.program_id(1)
        base = pl.multiple_of(tile_idx * TILE_L, 128)
        window = x_ref[0, :, pl.ds(base, W)]                  # (1, W), aligned

        if shift_bases is not None:
            # 8 taps per strided roll, one unmasked 8-row store per group.
            win8 = jnp.broadcast_to(window, (8, W))
            for g in range(n_groups):
                rolled = pltpu.roll(win8, shift_bases[g], axis=1,
                                    stride=1, stride_axis=0)  # (8, W)
                p_ref[8 * g:8 * g + 8, :] = rolled[:, :TILE_L]
        else:
            # Safe fallback: one unaligned lane slice + row store per tap.
            for row in range(K_rows):
                tap = row + 1
                p_ref[row:row + 1, :] = window[:, tap:tap + TILE_L]

        patch = p_ref[...]
        if use_bf16:
            patch = patch.astype(jnp.bfloat16)
        # Single MXU matmul per tile: (C_pad, K_rows) @ (K_rows, TILE_L).
        o_ref[0] = jnp.dot(f_ref[...], patch,
                           preferred_element_type=jnp.float32)

    # ---- launch --------------------------------------------------------------
    f_bytes = C_pad * K_rows * (2 if use_bf16 else 4)
    vmem_bytes = (2 * n_samples_pad * 4           # x block, double-buffered
                  + 2 * f_bytes                   # filter block
                  + 2 * C_pad * TILE_L * 4        # output tile
                  + K_rows * TILE_L * 4)          # patch scratch
    vmem_limit = int(min(max(2 * vmem_bytes, 32 << 20), 100 << 20))

    cost = pl.CostEstimate(
        flops=2 * B * C_pad * K_rows * L_out_pad,
        transcendentals=0,
        bytes_accessed=int(B * n_samples_pad * 4 + f_bytes
                           + B * C_pad * L_out_pad * 4),
    )

    out_p = pl.pallas_call(
        conv_kernel,
        out_shape=jax.ShapeDtypeStruct((B, C_pad, L_out_pad), jnp.float32),
        grid=(B, num_l),
        in_specs=[
            # Whole per-batch waveform resident; index_map ignores the L axis
            # so it is DMA'd once per batch, not per tile.
            pl.BlockSpec((1, 1, n_samples_pad), lambda b, j: (b, 0, 0)),
            pl.BlockSpec((C_pad, K_rows), lambda b, j: (0, 0)),
        ],
        out_specs=pl.BlockSpec((1, C_pad, TILE_L), lambda b, j: (b, 0, j)),
        scratch_shapes=[pltpu.VMEM((K_rows, TILE_L), jnp.float32)],
        compiler_params=pltpu.CompilerParams(
            dimension_semantics=("parallel", "parallel"),
            vmem_limit_bytes=vmem_limit),
        cost_estimate=cost,
    )(x_p, f_in)

    # Strip channel / length padding outside the kernel.
    return out_p[:, :C, :L_out]


def sinc_conv_forward(params, waveforms, tile_l=1024, use_bf16=False):
    filters = compute_sinc_filters(params)
    out = sinc_conv1d_pallas(waveforms, filters, tile_l=tile_l,
                             use_bf16=use_bf16)
    return out, filters


# -------------------- demo / self-check --------------------------------------
if __name__ == "__main__":
    B = 2
    n_samples = 300
    out_channels = 16
    kernel_size = 16        # module pads to 17 (odd)
    sample_rate = 16000

    params = init_sinc_params(out_channels, kernel_size, sample_rate)
    K = params['kernel_size']
    L_out = n_samples - K + 1

    key = jax.random.PRNGKey(0)
    x = jax.random.normal(key, (B, 1, n_samples), dtype=jnp.float32)

    # f32 path, small tile so several L-tiles are exercised.
    out_f32, filters = sinc_conv_forward(params, x, tile_l=128)
    out_f32 = jax.block_until_ready(out_f32)
    # bf16-operand path (v6e/v7x MXU), default tile.
    out_bf16, _ = sinc_conv_forward(params, x, use_bf16=True)
    out_bf16 = jax.block_until_ready(out_bf16)

    # High-precision pure-JAX reference (valid conv1d, NCW / OIW semantics).
    idx = jnp.arange(L_out)[:, None] + jnp.arange(K)[None, :]
    patches = x[:, 0, :][:, idx]                               # (B, L_out, K)
    ref = jnp.einsum('ck,blk->bcl', filters, patches,
                     precision=jax.lax.Precision.HIGHEST)

    assert out_f32.shape == (B, out_channels, L_out)
    assert out_bf16.shape == (B, out_channels, L_out)
    assert jnp.allclose(out_f32, ref, atol=5e-4, rtol=5e-4), "f32 mismatch"
    assert jnp.allclose(out_bf16, ref, atol=5e-2, rtol=5e-2), "bf16 mismatch"

    print("KERNEL_OK")
</pallas_src>

<mosaic_0001>
module attributes {stable_mosaic.version = 11 : i64} {
  func.func @_probe(%arg0: memref<8x256xf32, #tpu.memory_space<vmem>>, %arg1: memref<8x256xf32, #tpu.memory_space<vmem>>) attributes {dimension_semantics = [], scalar_prefetch = 0 : i64, scratch_operands = 0 : i64, tpu.core_type = #tpu.core_type<tc>} {
    %c0 = arith.constant 0 : index
    %c0_0 = arith.constant 0 : index
    %0 = vector.load %arg0[%c0, %c0_0] : memref<8x256xf32, #tpu.memory_space<vmem>>, vector<8x256xf32>
    %c5_i32 = arith.constant 5 : i32
    %1 = tpu.dynamic_rotate %0 by %c5_i32 dim 1 {stride = 1 : si32, stride_dimension = 0 : si32} : vector<8x256xf32>, i32 -> vector<8x256xf32>
    %c0_1 = arith.constant 0 : index
    %c0_2 = arith.constant 0 : index
    %2 = vector.load %arg1[%c0_1, %c0_2] : memref<8x256xf32, #tpu.memory_space<vmem>>, vector<8x256xf32>
    tpu.vector_store %arg1[%c0_1, %c0_2], %1 {strides = array<i32>} : memref<8x256xf32, #tpu.memory_space<vmem>>, vector<8x256xf32>,
    return
  }
}

module attributes {stable_mosaic.version = 11 : i64} {
  func.func @conv_kernel(%arg0: i32, %arg1: i32, %arg2: memref<1x1x512xf32, #tpu.memory_space<vmem>>, %arg3: memref<16x24xf32, #tpu.memory_space<vmem>>, %arg4: memref<1x16x128xf32, #tpu.memory_space<vmem>>, %arg5: memref<24x128xf32, #tpu.memory_space<vmem>>) attributes {dimension_semantics = [#tpu.dimension_semantics<parallel>, #tpu.dimension_semantics<parallel>], iteration_bounds = array<i64: 2, 3>, scalar_prefetch = 0 : i64, scratch_operands = 1 : i64, tpu.core_type = #tpu.core_type<tc>, window_params = [{transform_indices = @transform_0, window_bounds = array<i64: 1, 1, 512>}, {pipeline_mode = #tpu.pipeline_mode<synchronous>, transform_indices = @transform_1, window_bounds = array<i64: 16, 24>}, {transform_indices = @transform_2, window_bounds = array<i64: 1, 16, 128>}]} {
    %c128_i32 = arith.constant 128 : i32
    %0 = arith.muli %arg1, %c128_i32 : i32
    %1 = tpu.assume_multiple %0, 128 : i32
    %c0 = arith.constant 0 : index
    %c0_0 = arith.constant 0 : index
    %2 = arith.index_cast %1 : i32 to index
    %3 = vector.load %arg2[%c0, %c0_0, %2] : memref<1x1x512xf32, #tpu.memory_space<vmem>>, vector<1x1x256xf32>
    %4 = vector.shape_cast %3 : vector<1x1x256xf32> to vector<1x256xf32>
    %5 = vector.extract_strided_slice %4 {offsets = [0, 1], sizes = [1, 128], strides = [1, 1]} : vector<1x256xf32> to vector<1x128xf32>
    %c0_1 = arith.constant 0 : index
    %c0_2 = arith.constant 0 : index
    %6 = vector.load %arg5[%c0_1, %c0_2] : memref<24x128xf32, #tpu.memory_space<vmem>>, vector<1x128xf32>
    tpu.vector_store %arg5[%c0_1, %c0_2], %5 {strides = array<i32>} : memref<24x128xf32, #tpu.memory_space<vmem>>, vector<1x128xf32>,
    %7 = vector.extract_strided_slice %4 {offsets = [0, 2], sizes = [1, 128], strides = [1, 1]} : vector<1x256xf32> to vector<1x128xf32>
    %c1 = arith.constant 1 : index
    %c0_3 = arith.constant 0 : index
    %8 = vector.load %arg5[%c1, %c0_3] : memref<24x128xf32, #tpu.memory_space<vmem>>, vector<1x128xf32>
    tpu.vector_store %arg5[%c1, %c0_3], %7 {strides = array<i32>} : memref<24x128xf32, #tpu.memory_space<vmem>>, vector<1x128xf32>,
    %9 = vector.extract_strided_slice %4 {offsets = [0, 3], sizes = [1, 128], strides = [1, 1]} : vector<1x256xf32> to vector<1x128xf32>
    %c2 = arith.constant 2 : index
    %c0_4 = arith.constant 0 : index
    %10 = vector.load %arg5[%c2, %c0_4] : memref<24x128xf32, #tpu.memory_space<vmem>>, vector<1x128xf32>
    tpu.vector_store %arg5[%c2, %c0_4], %9 {strides = array<i32>} : memref<24x128xf32, #tpu.memory_space<vmem>>, vector<1x128xf32>,
    %11 = vector.extract_strided_slice %4 {offsets = [0, 4], sizes = [1, 128], strides = [1, 1]} : vector<1x256xf32> to vector<1x128xf32>
    %c3 = arith.constant 3 : index
    %c0_5 = arith.constant 0 : index
    %12 = vector.load %arg5[%c3, %c0_5] : memref<24x128xf32, #tpu.memory_space<vmem>>, vector<1x128xf32>
    tpu.vector_store %arg5[%c3, %c0_5], %11 {strides = array<i32>} : memref<24x128xf32, #tpu.memory_space<vmem>>, vector<1x128xf32>,
    %13 = vector.extract_strided_slice %4 {offsets = [0, 5], sizes = [1, 128], strides = [1, 1]} : vector<1x256xf32> to vector<1x128xf32>
    %c4 = arith.constant 4 : index
    %c0_6 = arith.constant 0 : index
    %14 = vector.load %arg5[%c4, %c0_6] : memref<24x128xf32, #tpu.memory_space<vmem>>, vector<1x128xf32>
    tpu.vector_store %arg5[%c4, %c0_6], %13 {strides = array<i32>} : memref<24x128xf32, #tpu.memory_space<vmem>>, vector<1x128xf32>,
    %15 = vector.extract_strided_slice %4 {offsets = [0, 6], sizes = [1, 128], strides = [1, 1]} : vector<1x256xf32> to vector<1x128xf32>
    %c5 = arith.constant 5 : index
    %c0_7 = arith.constant 0 : index
    %16 = vector.load %arg5[%c5, %c0_7] : memref<24x128xf32, #tpu.memory_space<vmem>>, vector<1x128xf32>
    tpu.vector_store %arg5[%c5, %c0_7], %15 {strides = array<i32>} : memref<24x128xf32, #tpu.memory_space<vmem>>, vector<1x128xf32>,
    %17 = vector.extract_strided_slice %4 {offsets = [0, 7], sizes = [1, 128], strides = [1, 1]} : vector<1x256xf32> to vector<1x128xf32>
    %c6 = arith.constant 6 : index
    %c0_8 = arith.constant 0 : index
    %18 = vector.load %arg5[%c6, %c0_8] : memref<24x128xf32, #tpu.memory_space<vmem>>, vector<1x128xf32>
    tpu.vector_store %arg5[%c6, %c0_8], %17 {strides = array<i32>} : memref<24x128xf32, #tpu.memory_space<vmem>>, vector<1x128xf32>,
    %19 = vector.extract_strided_slice %4 {offsets = [0, 8], sizes = [1, 128], strides = [1, 1]} : vector<1x256xf32> to vector<1x128xf32>
    %c7 = arith.constant 7 : index
    %c0_9 = arith.constant 0 : index
    %20 = vector.load %arg5[%c7, %c0_9] : memref<24x128xf32, #tpu.memory_space<vmem>>, vector<1x128xf32>
    tpu.vector_store %arg5[%c7, %c0_9], %19 {strides = array<i32>} : memref<24x128xf32, #tpu.memory_space<vmem>>, vector<1x128xf32>,
    %21 = vector.extract_strided_slice %4 {offsets = [0, 9], sizes = [1, 128], strides = [1, 1]} : vector<1x256xf32> to vector<1x128xf32>
    %c8 = arith.constant 8 : index
    %c0_10 = arith.constant 0 : index
    %22 = vector.load %arg5[%c8, %c0_10] : memref<24x128xf32, #tpu.memory_space<vmem>>, vector<1x128xf32>
    tpu.vector_store %arg5[%c8, %c0_10], %21 {strides = array<i32>} : memref<24x128xf32, #tpu.memory_space<vmem>>, vector<1x128xf32>,
    %23 = vector.extract_strided_slice %4 {offsets = [0, 10], sizes = [1, 128], strides = [1, 1]} : vector<1x256xf32> to vector<1x128xf32>
    %c9 = arith.constant 9 : index
    %c0_11 = arith.constant 0 : index
    %24 = vector.load %arg5[%c9, %c0_11] : memref<24x128xf32, #tpu.memory_space<vmem>>, vector<1x128xf32>
    tpu.vector_store %arg5[%c9, %c0_11], %23 {strides = array<i32>} : memref<24x128xf32, #tpu.memory_space<vmem>>, vector<1x128xf32>,
    %25 = vector.extract_strided_slice %4 {offsets = [0, 11], sizes = [1, 128], strides = [1, 1]} : vector<1x256xf32> to vector<1x128xf32>
    %c10 = arith.constant 10 : index
    %c0_12 = arith.constant 0 : index
    %26 = vector.load %arg5[%c10, %c0_12] : memref<24x128xf32, #tpu.memory_space<vmem>>, vector<1x128xf32>
    tpu.vector_store %arg5[%c10, %c0_12], %25 {strides = array<i32>} : memref<24x128xf32, #tpu.memory_space<vmem>>, vector<1x128xf32>,
    %27 = vector.extract_strided_slice %4 {offsets = [0, 12], sizes = [1, 128], strides = [1, 1]} : vector<1x256xf32> to vector<1x128xf32>
    %c11 = arith.constant 11 : index
    %c0_13 = arith.constant 0 : index
    %28 = vector.load %arg5[%c11, %c0_13] : memref<24x128xf32, #tpu.memory_space<vmem>>, vector<1x128xf32>
    tpu.vector_store %arg5[%c11, %c0_13], %27 {strides = array<i32>} : memref<24x128xf32, #tpu.memory_space<vmem>>, vector<1x128xf32>,
    %29 = vector.extract_strided_slice %4 {offsets = [0, 13], sizes = [1, 128], strides = [1, 1]} : vector<1x256xf32> to vector<1x128xf32>
    %c12 = arith.constant 12 : index
    %c0_14 = arith.constant 0 : index
    %30 = vector.load %arg5[%c12, %c0_14] : memref<24x128xf32, #tpu.memory_space<vmem>>, vector<1x128xf32>
    tpu.vector_store %arg5[%c12, %c0_14], %29 {strides = array<i32>} : memref<24x128xf32, #tpu.memory_space<vmem>>, vector<1x128xf32>,
    %31 = vector.extract_strided_slice %4 {offsets = [0, 14], sizes = [1, 128], strides = [1, 1]} : vector<1x256xf32> to vector<1x128xf32>
    %c13 = arith.constant 13 : index
    %c0_15 = arith.constant 0 : index
    %32 = vector.load %arg5[%c13, %c0_15] : memref<24x128xf32, #tpu.memory_space<vmem>>, vector<1x128xf32>
    tpu.vector_store %arg5[%c13, %c0_15], %31 {strides = array<i32>} : memref<24x128xf32, #tpu.memory_space<vmem>>, vector<1x128xf32>,
    %33 = vector.extract_strided_slice %4 {offsets = [0, 15], sizes = [1, 128], strides = [1, 1]} : vector<1x256xf32> to vector<1x128xf32>
    %c14 = arith.constant 14 : index
    %c0_16 = arith.constant 0 : index
    %34 = vector.load %arg5[%c14, %c0_16] : memref<24x128xf32, #tpu.memory_space<vmem>>, vector<1x128xf32>
    tpu.vector_store %arg5[%c14, %c0_16], %33 {strides = array<i32>} : memref<24x128xf32, #tpu.memory_space<vmem>>, vector<1x128xf32>,
    %35 = vector.extract_strided_slice %4 {offsets = [0, 16], sizes = [1, 128], strides = [1, 1]} : vector<1x256xf32> to vector<1x128xf32>
    %c15 = arith.constant 15 : index
    %c0_17 = arith.constant 0 : index
    %36 = vector.load %arg5[%c15, %c0_17] : memref<24x128xf32, #tpu.memory_space<vmem>>, vector<1x128xf32>
    tpu.vector_store %arg5[%c15, %c0_17], %35 {strides = array<i32>} : memref<24x128xf32, #tpu.memory_space<vmem>>, vector<1x128xf32>,
    %37 = vector.extract_strided_slice %4 {offsets = [0, 17], sizes = [1, 128], strides = [1, 1]} : vector<1x256xf32> to vector<1x128xf32>
    %c16 = arith.constant 16 : index
    %c0_18 = arith.constant 0 : index
    %38 = vector.load %arg5[%c16, %c0_18] : memref<24x128xf32, #tpu.memory_space<vmem>>, vector<1x128xf32>
    tpu.vector_store %arg5[%c16, %c0_18], %37 {strides = array<i32>} : memref<24x128xf32, #tpu.memory_space<vmem>>, vector<1x128xf32>,
    %39 = vector.extract_strided_slice %4 {offsets = [0, 18], sizes = [1, 128], strides = [1, 1]} : vector<1x256xf32> to vector<1x128xf32>
    %c17 = arith.constant 17 : index
    %c0_19 = arith.constant 0 : index
    %40 = vector.load %arg5[%c17, %c0_19] : memref<24x128xf32, #tpu.memory_space<vmem>>, vector<1x128xf32>
    tpu.vector_store %arg5[%c17, %c0_19], %39 {strides = array<i32>} : memref<24x128xf32, #tpu.memory_space<vmem>>, vector<1x128xf32>,
    %41 = vector.extract_strided_slice %4 {offsets = [0, 19], sizes = [1, 128], strides = [1, 1]} : vector<1x256xf32> to vector<1x128xf32>
    %c18 = arith.constant 18 : index
    %c0_20 = arith.constant 0 : index
    %42 = vector.load %arg5[%c18, %c0_20] : memref<24x128xf32, #tpu.memory_space<vmem>>, vector<1x128xf32>
    tpu.vector_store %arg5[%c18, %c0_20], %41 {strides = array<i32>} : memref<24x128xf32, #tpu.memory_space<vmem>>, vector<1x128xf32>,
    %43 = vector.extract_strided_slice %4 {offsets = [0, 20], sizes = [1, 128], strides = [1, 1]} : vector<1x256xf32> to vector<1x128xf32>
    %c19 = arith.constant 19 : index
    %c0_21 = arith.constant 0 : index
    %44 = vector.load %arg5[%c19, %c0_21] : memref<24x128xf32, #tpu.memory_space<vmem>>, vector<1x128xf32>
    tpu.vector_store %arg5[%c19, %c0_21], %43 {strides = array<i32>} : memref<24x128xf32, #tpu.memory_space<vmem>>, vector<1x128xf32>,
    %45 = vector.extract_strided_slice %4 {offsets = [0, 21], sizes = [1, 128], strides = [1, 1]} : vector<1x256xf32> to vector<1x128xf32>
    %c20 = arith.constant 20 : index
    %c0_22 = arith.constant 0 : index
    %46 = vector.load %arg5[%c20, %c0_22] : memref<24x128xf32, #tpu.memory_space<vmem>>, vector<1x128xf32>
    tpu.vector_store %arg5[%c20, %c0_22], %45 {strides = array<i32>} : memref<24x128xf32, #tpu.memory_space<vmem>>, vector<1x128xf32>,
    %47 = vector.extract_strided_slice %4 {offsets = [0, 22], sizes = [1, 128], strides = [1, 1]} : vector<1x256xf32> to vector<1x128xf32>
    %c21 = arith.constant 21 : index
    %c0_23 = arith.constant 0 : index
    %48 = vector.load %arg5[%c21, %c0_23] : memref<24x128xf32, #tpu.memory_space<vmem>>, vector<1x128xf32>
    tpu.vector_store %arg5[%c21, %c0_23], %47 {strides = array<i32>} : memref<24x128xf32, #tpu.memory_space<vmem>>, vector<1x128xf32>,
    %49 = vector.extract_strided_slice %4 {offsets = [0, 23], sizes = [1, 128], strides = [1, 1]} : vector<1x256xf32> to vector<1x128xf32>
    %c22 = arith.constant 22 : index
    %c0_24 = arith.constant 0 : index
    %50 = vector.load %arg5[%c22, %c0_24] : memref<24x128xf32, #tpu.memory_space<vmem>>, vector<1x128xf32>
    tpu.vector_store %arg5[%c22, %c0_24], %49 {strides = array<i32>} : memref<24x128xf32, #tpu.memory_space<vmem>>, vector<1x128xf32>,
    %51 = vector.extract_strided_slice %4 {offsets = [0, 24], sizes = [1, 128], strides = [1, 1]} : vector<1x256xf32> to vector<1x128xf32>
    %c23 = arith.constant 23 : index
    %c0_25 = arith.constant 0 : index
    %52 = vector.load %arg5[%c23, %c0_25] : memref<24x128xf32, #tpu.memory_space<vmem>>, vector<1x128xf32>
    tpu.vector_store %arg5[%c23, %c0_25], %51 {strides = array<i32>} : memref<24x128xf32, #tpu.memory_space<vmem>>, vector<1x128xf32>,
    %c0_26 = arith.constant 0 : index
    %c0_27 = arith.constant 0 : index
    %53 = vector.load %arg5[%c0_26, %c0_27] : memref<24x128xf32, #tpu.memory_space<vmem>>, vector<24x128xf32>
    %c0_28 = arith.constant 0 : index
    %c0_29 = arith.constant 0 : index
    %54 = vector.load %arg3[%c0_28, %c0_29] : memref<16x24xf32, #tpu.memory_space<vmem>>, vector<16x24xf32>
    %cst = arith.constant dense<0.000000e+00> : vector<16x128xf32>
    %55 = tpu.matmul %54, %53, %cst {dimension_numbers = #tpu.dot_dimension_numbers<[1], [0], [0], [1], [0, 0, 1, 1], [], []>} : vector<16x24xf32>, vector<24x128xf32>, vector<16x128xf32> -> vector<16x128xf32>
    %c0_30 = arith.constant 0 : index
    %c0_31 = arith.constant 0 : index
    %c0_32 = arith.constant 0 : index
    %56 = vector.load %arg4[%c0_30, %c0_31, %c0_32] : memref<1x16x128xf32, #tpu.memory_space<vmem>>, vector<1x16x128xf32>
    %57 = vector.shape_cast %56 : vector<1x16x128xf32> to vector<16x128xf32>
    %58 = vector.shape_cast %55 : vector<16x128xf32> to vector<1x16x128xf32>
    tpu.vector_store %arg4[%c0_30, %c0_31, %c0_32], %58 {strides = array<i32>} : memref<1x16x128xf32, #tpu.memory_space<vmem>>, vector<1x16x128xf32>,
    return
  }
  func.func @transform_0(%arg0: i32, %arg1: i32) -> (i32, i32, i32) {
    %c0_i32 = arith.constant 0 : i32
    %c0_i32_0 = arith.constant 0 : i32
    %c0_i32_1 = arith.constant 0 : i32
    return %arg0, %c0_i32, %c0_i32_0 : i32, i32, i32
  }
  func.func @transform_1(%arg0: i32, %arg1: i32) -> (i32, i32) {
    %c0_i32 = arith.constant 0 : i32
    %c0_i32_0 = arith.constant 0 : i32
    %c0_i32_1 = arith.constant 0 : i32
    return %c0_i32, %c0_i32_0 : i32, i32
  }
  func.func @transform_2(%arg0: i32, %arg1: i32) -> (i32, i32, i32) {
    %c0_i32 = arith.constant 0 : i32
    %c0_i32_0 = arith.constant 0 : i32
    return %arg0, %c0_i32, %arg1 : i32, i32, i32
  }
}

</mosaic_0001>

<llo_original>
// kernel: tpu_custom_call.1
$region0: #{tpu_custom_call.1}
  #allocation0 [shape = 'u32[]', space=smem, size = 0x4, offset = 0x4, fixed_abs, tag = 'smem constant byte address 0x4 - core index']
  #allocation1 [shape = 'u32[144,128]{1,0:T(1,128)}', space=vmem, size = 0x12000, scoped, tag = 'internal scratch']
  %s0 = inlined_call_operand.hbm [shape: f32[8,256], index: 0, kind: input, shape index: {}]
  %s1 = inlined_call_operand.hbm [shape: f32[8,256], index: 1, kind: output, shape index: {}]
  %s2 = sld [smem:[#allocation0]]
  $region18: #{tpu_custom_call.1} parent=0
    _
  %s4 = ssub.s32 1, %s2
  %s5 = scalar_select 0, %s4, %s2
  $region1: #{tpu_custom_call.1} parent=0
    #allocation2 [shape = 'u8[8192]{0}', space=vmem, size = 0x2000, scoped, tag = 'input window, operand 0, single buffered']
    #allocation3 [shape = 's32[1]{0}', space=sflag, size = 0x4, scoped, tag = 'scoped memory for tpu_custom_call.1']
    #allocation4 [shape = 's32[1]{0}', space=sflag, size = 0x4, scoped, tag = 'scoped memory for tpu_custom_call.1']
    #allocation5 [shape = 'u8[8192]{0}', space=vmem, size = 0x2000, scoped, tag = 'output window, operand 0, single buffered']
    %6 = vsyncpa [#allocation3], 0
    %7 = vsyncpa [#allocation4], 0
    // Predicated region
    $region2: #{tpu_custom_call.1} parent=1 // pred_check
      _
    $region3: #{tpu_custom_call.1} parent=1 // pred_check_branch
      %9 = sbr.rel (0) target = $region5
    $region4: #{tpu_custom_call.1} parent=1 // pred_region
      %s11 = ssub.s32 256, 256
      %12 = vsyncadd [#allocation3], %s11
      %s14 = sshll.u32 [#allocation2], 4
      %s15 = int_to_ptr.vmem [resolvable:$true] %s14
      %17 = dma.hbm_to_vmem [thread:$0]  %s0, 256, %s15, [#allocation3]
    $region5: #{tpu_custom_call.1} parent=1 // pred_fallthru
      _
    // Predicated region
    $region6: #{tpu_custom_call.1} parent=1 // pred_check
      _
    $region7: #{tpu_custom_call.1} parent=1 // pred_check_branch
      %19 = sbr.rel (0) target = $region9
    $region8: #{tpu_custom_call.1} parent=1 // pred_region
      %20 = dma.done [#allocation3], 256
    $region9: #{tpu_custom_call.1} parent=1 // pred_fallthru
      _
    %v21 = vld [vmem:[#allocation2] sm:$0xff]
    %v22 = vld [vmem:[#allocation2 + $0x8] sm:$0xff]
    %s24 = sor.u32 256, 5
    %25 = vrot.lane.b32.xlu0 %v21, %s24
    %v26 = vpop.permute.xlu0 %25
    %s28 = sor.u32 256, 5
    %29 = vrot.lane.b32.xlu0 %v22, %s28
    %v30 = vpop.permute.xlu0 %29
    %v31 = vlaneseq
    %v32 = vshrl.u32 %v31, 7
    %v33 = vadd.s32 %v32, 5
    %v34 = vlaneseq
    %v35 = vand.u32 %v34, 127
    %vm36 = vcmp.lt.s32.totalorder %v35, %v33
    %v37 = vsel %vm36, %v26, %v30
    %v38 = vsel %vm36, %v30, %v26
    %39 = vst [vmem:[#allocation5] sm:$0xff] %v38
    %40 = vst [vmem:[#allocation5 + $0x8] sm:$0xff] %v37
    // Predicated region
    $region10: #{tpu_custom_call.1} parent=1 // pred_check
      _
    $region11: #{tpu_custom_call.1} parent=1 // pred_check_branch
      %42 = sbr.rel (0) target = $region13
    $region12: #{tpu_custom_call.1} parent=1 // pred_region
      %s44 = ssub.s32 256, 256
      %45 = vsyncadd [#allocation4], %s44
      %s47 = sshll.u32 [#allocation5], 4
      %s48 = int_to_ptr.vmem [resolvable:$true] %s47
      %50 = dma.vmem_to_hbm [thread:$0]  %s48, 256, %s1, [#allocation4]
    $region13: #{tpu_custom_call.1} parent=1 // pred_fallthru
      _
    // Predicated region
    $region14: #{tpu_custom_call.1} parent=1 // pred_check
      _
    $region15: #{tpu_custom_call.1} parent=1 // pred_check_branch
      %52 = sbr.rel (0) target = $region17
    $region16: #{tpu_custom_call.1} parent=1 // pred_region
      %53 = dma.done [#allocation4], 256
    $region17: #{tpu_custom_call.1} parent=1 // pred_fallthru
      _
    %54 = vsyncpa [#allocation3], 1
    %55 = vsyncpa [#allocation4], 1

// kernel: tpu_custom_call.1
$region0: #{tpu_custom_call.1}
  #allocation0 [shape = 'u32[]', space=smem, size = 0x4, offset = 0x4, fixed_abs, tag = 'smem constant byte address 0x4 - core index']
  #allocation1 [shape = 'u32[144,128]{1,0:T(1,128)}', space=vmem, size = 0x12000, scoped, tag = 'internal scratch']
  #allocation2 [shape = 'f32[24,128]{1,0:T(8,128)}', space=vmem, size = 0x3000, scoped, tag = 'scratch operand']
  %s0 = inlined_call_operand.hbm [shape: f32[2,1,512], index: 0, kind: input, shape index: {}]
  %s1 = inlined_call_operand.hbm [shape: f32[16,24], index: 1, kind: input, shape index: {}]
  %s2 = inlined_call_operand.hbm [shape: f32[2,16,384], index: 2, kind: output, shape index: {}]
  %s3 = sld [smem:[#allocation0]]
  $region49: #{tpu_custom_call.1} parent=0
    _
  %s5 = ssub.s32 1, %s3
  %s6 = scalar_select 0, %s5, %s3
  $region1: #{tpu_custom_call.1} parent=0
    #allocation3 [shape = 'u8[4096]{0}', space=vmem, size = 0x1000, scoped, tag = 'input window, operand 0']
    #allocation4 [shape = 's32[2]{0}', space=sflag, size = 0x8, scoped, tag = 'scoped memory for tpu_custom_call.1']
    #allocation5 [shape = 's32[2]{0}', space=sflag, size = 0x8, scoped, tag = 'scoped memory for tpu_custom_call.1']
    #allocation6 [shape = 'u8[8192]{0}', space=vmem, size = 0x2000, scoped, tag = 'input window, operand 1, single buffered']
    #allocation7 [shape = 's32[1]{0}', space=sflag, size = 0x4, scoped, tag = 'scoped memory for tpu_custom_call.1']
    #allocation8 [shape = 'u8[16384]{0}', space=vmem, size = 0x4000, scoped, tag = 'output window, operand 0']
    %7 = vsyncpa [#allocation4], 0
    %s8 = scalar_lea.sflag [#allocation4], 1
    %9 = vsyncpa %s8, 0
    %10 = vsyncpa [#allocation7], 0
    %11 = vsyncpa [#allocation5], 0
    %s12 = scalar_lea.sflag [#allocation5], 1
    %13 = vsyncpa %s12, 0
    loop: start=0, step=1, limit=8
    $region2: #{tpu_custom_call.1} parent=1 // loop_pre_header
      _
    $region3: #{tpu_custom_call.1} parent=1 // loop_header
      %s15 = sphi 0, %s19
      %p16 = scmp.ge.s32.totalorder %s15, 8
      %s22 = sphi 0, %s34
      %s23 = sphi 0, %s30
      %s24 = sphi 0, %s22
      %s25 = sphi 0, %s23
      %s26 = sphi 0, %s24
      %s27 = sphi 0, %s25
      %s37 = sphi 0, %s39
      %s40 = sphi 0, %s37
      %s41 = sphi 0, %s40
      %s57 = sphi 0, %s41
      %s61 = sphi 0, %s61
      %s63 = sphi 0, %s61
      %s64 = sphi 0, %s63
      %s78 = sphi 0, %s64
      %s86 = sphi 0, %s88
      %s89 = sphi 0, %s86
      %s90 = sphi 0, %s89
      %s106 = sphi 0, %s90
    $region4: #{tpu_custom_call.1} parent=1 // loop_header_branch
      %18 = sbr.rel (%p16) target = $region8
    $region5: #{tpu_custom_call.1} parent=1 // loop_body
      %s20 = ssub.s32 %s15, 1
      %s21 = ssub.s32 %s15, 2
      %s28 = sadd.s32 1, %s23
      %p29 = scmp.ge.s32.totalorder %s28, 3
      %s30 = scalar_select %p29, 0, %s28
      %s31 = sadd.s32 1, %s22
      %s32 = scalar_select %p29, %s31, %s22
      %p33 = scmp.ge.s32.totalorder %s32, 2
      %s34 = scalar_select %p33, 0, %s32
      %s35 = ssub.s32 %s22, %s34
      %p36 = scmp.eq.s32.totalorder %s35, 0
      %s38 = sadd.s32 %s37, 1
      %s39 = scalar_select %p36, %s37, %s38
      %p42 = pneg %p36
      %p43 = scmp.eq.s32.totalorder %s15, 5
      %p44 = por %p42, %p43
      %p45 = scmp.ne.s32.totalorder %s37, %s40
      %p46 = scmp.eq.s32.totalorder %s15, 0
      %p47 = por %p45, %p46
      %p48 = scmp.ne.s32.totalorder %s37, %s40
      %p49 = scmp.eq.s32.totalorder %s20, 5
      %p50 = por %p48, %p49
      %p51 = scmp.ne.s32.totalorder %s40, %s41
      %p52 = scmp.eq.s32.totalorder %s20, 0
      %p53 = por %p51, %p52
      %p54 = scmp.ne.s32.totalorder %s40, %s41
      %p55 = scmp.eq.s32.totalorder %s21, 5
      %p56 = por %p54, %p55
      %p58 = scmp.ne.s32.totalorder %s41, %s57
      %p59 = scmp.eq.s32.totalorder %s21, 0
      %p60 = por %p58, %p59
      %s62 = sadd.s32 %s61, 1
      %p65 = scmp.eq.s32.totalorder %s15, 5
      %p66 = scmp.ne.s32.totalorder %s61, %s63
      %p67 = scmp.eq.s32.totalorder %s15, 0
      %p68 = por %p66, %p67
      %p69 = scmp.ne.s32.totalorder %s61, %s63
      %p70 = scmp.eq.s32.totalorder %s20, 5
      %p71 = por %p69, %p70
      %p72 = scmp.ne.s32.totalorder %s63, %s64
      %p73 = scmp.eq.s32.totalorder %s20, 0
      %p74 = por %p72, %p73
      %p75 = scmp.ne.s32.totalorder %s63, %s64
      %p76 = scmp.eq.s32.totalorder %s21, 5
      %p77 = por %p75, %p76
      %p79 = scmp.ne.s32.totalorder %s64, %s78
      %p80 = scmp.eq.s32.totalorder %s21, 0
      %p81 = por %p79, %p80
      %s82 = ssub.s32 %s22, %s34
      %s83 = ssub.s32 %s23, %s30
      %s84 = sor.u32 %s82, %s83
      %p85 = scmp.eq.s32.totalorder %s84, 0
      %s87 = sadd.s32 %s86, 1
      %s88 = scalar_select %p85, %s86, %s87
      %p91 = pneg %p85
      %p92 = scmp.eq.s32.totalorder %s15, 5
      %p93 = por %p91, %p92
      %p94 = scmp.ne.s32.totalorder %s86, %s89
      %p95 = scmp.eq.s32.totalorder %s15, 0
      %p96 = por %p94, %p95
      %p97 = scmp.ne.s32.totalorder %s86, %s89
      %p98 = scmp.eq.s32.totalorder %s20, 5
      %p99 = por %p97, %p98
      %p100 = scmp.ne.s32.totalorder %s89, %s90
      %p101 = scmp.eq.s32.totalorder %s20, 0
      %p102 = por %p100, %p101
      %p103 = scmp.ne.s32.totalorder %s89, %s90
      %p104 = scmp.eq.s32.totalorder %s21, 5
      %p105 = por %p103, %p104
      %p107 = scmp.ne.s32.totalorder %s90, %s106
      %p108 = scmp.eq.s32.totalorder %s21, 0
      %p109 = por %p107, %p108
      %p110 = scmp.le.s32.totalorder 1, %s15
      %p111 = scmp.lt.s32.totalorder %s15, 7
      %p112 = pnand %p110, %p111
      %p113 = pneg %p112
      // Predicated region
      $region9: #{tpu_custom_call.1} parent=5 // pred_check
        _
      $region10: #{tpu_custom_call.1} parent=5 // pred_check_branch
        %115 = sbr.rel (%p112) target = $region12
      $region11: #{tpu_custom_call.1} parent=5 // pred_region
        %s116 = ssub.s32 %s15, 1
        // Predicated region
        $region13: #{tpu_custom_call.1} parent=11 // pred_check
          %p117 = pneg %p74
        $region14: #{tpu_custom_call.1} parent=11 // pred_check_branch
          %119 = sbr.rel (%p117) target = $region16
        $region15: #{tpu_custom_call.1} parent=11 // pred_region
          %s121 = ssub.s32 256, 256
          %122 = vsyncadd [#allocation7], %s121
          %s123 = sshll.u32 [#allocation6], 4
          %s124 = int_to_ptr.vmem [resolvable:$true] %s123
          %129 = dma.hbm_to_vmem [thread:$0]  %s1, 256, %s124, [#allocation7], 128, 128, 8
        $region16: #{tpu_custom_call.1} parent=11 // pred_fallthru
          _
      $region12: #{tpu_custom_call.1} parent=5 // pred_fallthru
        _
      %p130 = scmp.lt.s32.totalorder %s15, 6
      // Predicated region
      $region17: #{tpu_custom_call.1} parent=5 // pred_check
        %p131 = pneg %p130
      $region18: #{tpu_custom_call.1} parent=5 // pred_check_branch
        %133 = sbr.rel (%p131) target = $region20
      $region19: #{tpu_custom_call.1} parent=5 // pred_region
        // Predicated region
        $region21: #{tpu_custom_call.1} parent=19 // pred_check
          %p134 = pneg %p47
        $region22: #{tpu_custom_call.1} parent=19 // pred_check_branch
          %136 = sbr.rel (%p134) target = $region24
        $region23: #{tpu_custom_call.1} parent=19 // pred_region
          %s137 = sand.u32 %s37, 1
          %s138 = scalar_lea.sflag [#allocation4], %s137
          %s139 = sand.u32 %s37, 1
          %s140 = smul.addr %s139, 4
          %s141 = scalar_lea.vmem [#allocation3], %s140
          %s143 = ssub.s32 64, 64
          %144 = vsyncadd %s138, %s143
          %s145 = smul.addr %s22, 4
          %s146 = smul.addr %s145, 16
          %s147 = scalar_lea.hbm %s0, %s146
          %s149 = sshll.u32 %s141, 4
          %s150 = int_to_ptr.vmem [resolvable:$true] %s149
          %152 = dma.hbm_to_vmem [thread:$0]  %s147, 64, %s150, %s138
        $region24: #{tpu_custom_call.1} parent=19 // pred_fallthru
          _
      $region20: #{tpu_custom_call.1} parent=5 // pred_fallthru
        _
      %p153 = scmp.le.s32.totalorder 1, %s15
      %p154 = scmp.lt.s32.totalorder %s15, 7
      %p155 = pnand %p153, %p154
      %p156 = pneg %p155
      // Predicated region
      $region25: #{tpu_custom_call.1} parent=5 // pred_check
        _
      $region26: #{tpu_custom_call.1} parent=5 // pred_check_branch
        %158 = sbr.rel (%p155) target = $region28
      $region27: #{tpu_custom_call.1} parent=5 // pred_region
        %s159 = ssub.s32 %s15, 1
        %s160 = sand.u32 %s40, 1
        %s161 = scalar_lea.sflag [#allocation4], %s160
        %s162 = sand.u32 %s40, 1
        %s163 = smul.addr %s162, 4
        %s164 = scalar_lea.vmem [#allocation3], %s163
        // Predicated region
        $region29: #{tpu_custom_call.1} parent=27 // pred_check
          %p165 = pneg %p53
        $region30: #{tpu_custom_call.1} parent=27 // pred_check_branch
          %167 = sbr.rel (%p165) target = $region32
        $region31: #{tpu_custom_call.1} parent=27 // pred_region
          %168 = dma.done %s161, 64
        $region32: #{tpu_custom_call.1} parent=27 // pred_fallthru
          _
        // Predicated region
        $region33: #{tpu_custom_call.1} parent=27 // pred_check
          %p169 = pneg %p74
        $region34: #{tpu_custom_call.1} parent=27 // pred_check_branch
          %171 = sbr.rel (%p169) target = $region36
        $region35: #{tpu_custom_call.1} parent=27 // pred_region
          %172 = dma.done [#allocation7], 256
        $region36: #{tpu_custom_call.1} parent=27 // pred_fallthru
          _
        %s173 = sand.u32 %s40, 1
        %s174 = scalar_lea.sflag [#allocation4], %s173
        %s175 = sand.u32 %s40, 1
        %s176 = smul.addr %s175, 4
        %s177 = scalar_lea.vmem [#allocation3], %s176
        %p178 = pneg %p53
        %p179 = pneg %p50
        %p180 = pneg %p74
        %p181 = pneg %p71
        %p182 = pneg %p102
        %p183 = pneg %p99
        %s184 = sand.u32 %s89, 1
        %s185 = scalar_lea.sflag [#allocation5], %s184
        %s186 = sand.u32 %s89, 1
        %s187 = smul.addr %s186, 16
        %s188 = scalar_lea.vmem [#allocation8], %s187
        %s189 = smul.u32 %s25, 128
        %s190 = sshra.s32 %s189, 7
        %s191 = sand.u32 %s189, 127
        %s192 = scalar_lea.vmem %s164, %s190 [#allocation3]
        %v193 = vld [vmem:[%s192] sm:$0x3]
        %v195 = vlaneseq
        %v196 = vshrl.u32 %v195, 7
        %v197 = vsub.s32 0, %v196
        %v198 = vrot.slane %v193, %v197
        %v199 = vlaneseq
        %v200 = vshrl.u32 %v199, 7
        %v201 = vsub.s32 1, %v200
        %v202 = vrot.slane %v193, %v201
        %203 = vrot.lane.b32.xlu0 %v198, 127
        %v204 = vpop.permute.xlu0 %203
        %205 = vrot.lane.b32.xlu0 %v202, 127
        %v206 = vpop.permute.xlu0 %205
        %vm207 = vcmask 1039360
        %v208 = vsel %vm207, %v204, %v206
        %210 = vst [vmem:[#allocation2] sm:$0x1] %v208
        %211 = vrot.lane.b32.xlu0 %v198, 126
        %v212 = vpop.permute.xlu0 %211
        %213 = vrot.lane.b32.xlu0 %v202, 126
        %v214 = vpop.permute.xlu0 %213
        %vm215 = vcmask 1031168
        %v216 = vsel %vm215, %v212, %v214
        %218 = vst [vmem:[#allocation2 + $0x1] sm:$0x1] %v216
        %219 = vrot.lane.b32.xlu0 %v198, 125
        %v220 = vpop.permute.xlu0 %219
        %221 = vrot.lane.b32.xlu0 %v202, 125
        %v222 = vpop.permute.xlu0 %221
        %vm223 = vcmask 1022976
        %v224 = vsel %vm223, %v220, %v222
        %226 = vst [vmem:[#allocation2 + $0x2] sm:$0x1] %v224
        %227 = vrot.lane.b32.xlu0 %v198, 124
        %v228 = vpop.permute.xlu0 %227
        %229 = vrot.lane.b32.xlu0 %v202, 124
        %v230 = vpop.permute.xlu0 %229
        %vm231 = vcmask 1014784
        %v232 = vsel %vm231, %v228, %v230
        %234 = vst [vmem:[#allocation2 + $0x3] sm:$0x1] %v232
        %235 = vrot.lane.b32.xlu0 %v198, 123
        %v236 = vpop.permute.xlu0 %235
        %237 = vrot.lane.b32.xlu0 %v202, 123
        %v238 = vpop.permute.xlu0 %237
        %vm239 = vcmask 1006592
        %v240 = vsel %vm239, %v236, %v238
        %242 = vst [vmem:[#allocation2 + $0x4] sm:$0x1] %v240
        %243 = vrot.lane.b32.xlu0 %v198, 122
        %v244 = vpop.permute.xlu0 %243
        %245 = vrot.lane.b32.xlu0 %v202, 122
        %v246 = vpop.permute.xlu0 %245
        %vm247 = vcmask 998400
        %v248 = vsel %vm247, %v244, %v246
        %250 = vst [vmem:[#allocation2 + $0x5] sm:$0x1] %v248
        %251 = vrot.lane.b32.xlu0 %v198, 121
        %v252 = vpop.permute.xlu0 %251
        %253 = vrot.lane.b32.xlu0 %v202, 121
        %v254 = vpop.permute.xlu0 %253
        %vm255 = vcmask 990208
        %v256 = vsel %vm255, %v252, %v254
        %258 = vst [vmem:[#allocation2 + $0x6] sm:$0x1] %v256
        %259 = vrot.lane.b32.xlu0 %v198, 120
        %v260 = vpop.permute.xlu0 %259
        %261 = vrot.lane.b32.xlu0 %v202, 120
        %v262 = vpop.permute.xlu0 %261
        %vm263 = vcmask 982016
        %v264 = vsel %vm263, %v260, %v262
        %266 = vst [vmem:[#allocation2 + $0x7] sm:$0x1] %v264
        %267 = vrot.lane.b32.xlu0 %v198, 119
        %v268 = vpop.permute.xlu0 %267
        %269 = vrot.lane.b32.xlu0 %v202, 119
        %v270 = vpop.permute.xlu0 %269
        %vm271 = vcmask 973824
        %v272 = vsel %vm271, %v268, %v270
        %274 = vst [vmem:[#allocation2 + $0x8] sm:$0x1] %v272
        %275 = vrot.lane.b32.xlu0 %v198, 118
        %v276 = vpop.permute.xlu0 %275
        %277 = vrot.lane.b32.xlu0 %v202, 118
        %v278 = vpop.permute.xlu0 %277
        %vm279 = vcmask 965632
        %v280 = vsel %vm279, %v276, %v278
        %282 = vst [vmem:[#allocation2 + $0x9] sm:$0x1] %v280
        %283 = vrot.lane.b32.xlu0 %v198, 117
        %v284 = vpop.permute.xlu0 %283
        %285 = vrot.lane.b32.xlu0 %v202, 117
        %v286 = vpop.permute.xlu0 %285
        %vm287 = vcmask 957440
        %v288 = vsel %vm287, %v284, %v286
        %290 = vst [vmem:[#allocation2 + $0xa] sm:$0x1] %v288
        %291 = vrot.lane.b32.xlu0 %v198, 116
        %v292 = vpop.permute.xlu0 %291
        %293 = vrot.lane.b32.xlu0 %v202, 116
        %v294 = vpop.permute.xlu0 %293
        %vm295 = vcmask 949248
        %v296 = vsel %vm295, %v292, %v294
        %298 = vst [vmem:[#allocation2 + $0xb] sm:$0x1] %v296
        %299 = vrot.lane.b32.xlu0 %v198, 115
        %v300 = vpop.permute.xlu0 %299
        %301 = vrot.lane.b32.xlu0 %v202, 115
        %v302 = vpop.permute.xlu0 %301
        %vm303 = vcmask 941056
        %v304 = vsel %vm303, %v300, %v302
        %306 = vst [vmem:[#allocation2 + $0xc] sm:$0x1] %v304
        %307 = vrot.lane.b32.xlu0 %v198, 114
        %v308 = vpop.permute.xlu0 %307
        %309 = vrot.lane.b32.xlu0 %v202, 114
        %v310 = vpop.permute.xlu0 %309
        %vm311 = vcmask 932864
        %v312 = vsel %vm311, %v308, %v310
        %314 = vst [vmem:[#allocation2 + $0xd] sm:$0x1] %v312
        %315 = vrot.lane.b32.xlu0 %v198, 113
        %v316 = vpop.permute.xlu0 %315
        %317 = vrot.lane.b32.xlu0 %v202, 113
        %v318 = vpop.permute.xlu0 %317
        %vm319 = vcmask 924672
        %v320 = vsel %vm319, %v316, %v318
        %322 = vst [vmem:[#allocation2 + $0xe] sm:$0x1] %v320
        %323 = vrot.lane.b32.xlu0 %v198, 112
        %v324 = vpop.permute.xlu0 %323
        %325 = vrot.lane.b32.xlu0 %v202, 112
        %v326 = vpop.permute.xlu0 %325
        %vm327 = vcmask 916480
        %v328 = vsel %vm327, %v324, %v326
        %330 = vst [vmem:[#allocation2 + $0xf] sm:$0x1] %v328
        %331 = vrot.lane.b32.xlu0 %v198, 111
        %v332 = vpop.permute.xlu0 %331
        %333 = vrot.lane.b32.xlu0 %v202, 111
        %v334 = vpop.permute.xlu0 %333
        %vm335 = vcmask 908288
        %v336 = vsel %vm335, %v332, %v334
        %338 = vst [vmem:[#allocation2 + $0x10] sm:$0x1] %v336
        %339 = vrot.lane.b32.xlu0 %v198, 110
        %v340 = vpop.permute.xlu0 %339
        %341 = vrot.lane.b32.xlu0 %v202, 110
        %v342 = vpop.permute.xlu0 %341
        %vm343 = vcmask 900096
        %v344 = vsel %vm343, %v340, %v342
        %346 = vst [vmem:[#allocation2 + $0x11] sm:$0x1] %v344
        %347 = vrot.lane.b32.xlu0 %v198, 109
        %v348 = vpop.permute.xlu0 %347
        %349 = vrot.lane.b32.xlu0 %v202, 109
        %v350 = vpop.permute.xlu0 %349
        %vm351 = vcmask 891904
        %v352 = vsel %vm351, %v348, %v350
        %354 = vst [vmem:[#allocation2 + $0x12] sm:$0x1] %v352
        %355 = vrot.lane.b32.xlu0 %v198, 108
        %v356 = vpop.permute.xlu0 %355
        %357 = vrot.lane.b32.xlu0 %v202, 108
        %v358 = vpop.permute.xlu0 %357
        %vm359 = vcmask 883712
        %v360 = vsel %vm359, %v356, %v358
        %362 = vst [vmem:[#allocation2 + $0x13] sm:$0x1] %v360
        %363 = vrot.lane.b32.xlu0 %v198, 107
        %v364 = vpop.permute.xlu0 %363
        %365 = vrot.lane.b32.xlu0 %v202, 107
        %v366 = vpop.permute.xlu0 %365
        %vm367 = vcmask 875520
        %v368 = vsel %vm367, %v364, %v366
        %370 = vst [vmem:[#allocation2 + $0x14] sm:$0x1] %v368
        %371 = vrot.lane.b32.xlu0 %v198, 106
        %v372 = vpop.permute.xlu0 %371
        %373 = vrot.lane.b32.xlu0 %v202, 106
        %v374 = vpop.permute.xlu0 %373
        %vm375 = vcmask 867328
        %v376 = vsel %vm375, %v372, %v374
        %378 = vst [vmem:[#allocation2 + $0x15] sm:$0x1] %v376
        %379 = vrot.lane.b32.xlu0 %v198, 105
        %v380 = vpop.permute.xlu0 %379
        %381 = vrot.lane.b32.xlu0 %v202, 105
        %v382 = vpop.permute.xlu0 %381
        %vm383 = vcmask 859136
        %v384 = vsel %vm383, %v380, %v382
        %386 = vst [vmem:[#allocation2 + $0x16] sm:$0x1] %v384
        %387 = vrot.lane.b32.xlu0 %v198, 104
        %v388 = vpop.permute.xlu0 %387
        %389 = vrot.lane.b32.xlu0 %v202, 104
        %v390 = vpop.permute.xlu0 %389
        %vm391 = vcmask 850944
        %v392 = vsel %vm391, %v388, %v390
        %394 = vst [vmem:[#allocation2 + $0x17] sm:$0x1] %v392
        %v395 = vld [vmem:[#allocation2] sm:$0xff]
        %v396 = vld [vmem:[#allocation2 + $0x8] sm:$0xff]
        %v397 = vld [vmem:[#allocation2 + $0x10] sm:$0xff]
        %v398 = vld [vmem:[#allocation6] sm:$0xff]
        %v399 = vld [vmem:[#allocation6 + $0x8] sm:$0xff]
        %vm400 = vcmask 195584
        %v402 = vsel %vm400, %v398, 0
        %v405 = vsel %vm400, %v399, 0
        %407 = vmatprep.subr.mxu0 0.0
        %408 = vmatpush1.msra.mxu0 0.0
        %409 = vmatprep.subr.mxu0 0.0
        %410 = vmatpush1.msra.mxu0 0.0
        %411 = vmatprep.subr.mxu0 0.0
        %412 = vmatpush1.msra.mxu0 0.0
        %413 = vmatprep.subr.mxu0 0.0
        %414 = vmatpush1.msra.mxu0 0.0
        %415 = vmatprep.subr.mxu0 0.0
        %416 = vmatpush1.msra.mxu0 0.0
        %417 = vmatprep.subr.mxu0 0.0
        %418 = vmatpush1.msra.mxu0 0.0
        %419 = vmatprep.subr.mxu0 0.0
        %420 = vmatpush1.msra.mxu0 0.0
        %421 = vmatprep.subr.mxu0 0.0
        %422 = vmatpush1.msra.mxu0 0.0
        %423 = vmatprep.subr.mxu0 0.0
        %424 = vmatpush1.msra.mxu0 0.0
        %425 = vmatprep.subr.mxu0 0.0
        %426 = vmatpush1.msra.mxu0 0.0
        %427 = vmatprep.subr.mxu0 0.0
        %428 = vmatpush1.msra.mxu0 0.0
        %429 = vmatprep.subr.mxu0 0.0
        %430 = vmatpush1.msra.mxu0 0.0
        %431 = vmatprep.subr.mxu0 0.0
        %432 = vmatpush1.msra.mxu0 0.0
        %433 = vmatprep.subr.mxu0 0.0
        %434 = vmatpush1.msra.mxu0 %v397
        %435 = vmatprep.subr.mxu0 0.0
        %436 = vmatpush1.msra.mxu0 %v396
        %437 = vmatprep.subr.mxu0 0.0
        %438 = vmatpush1.msra.mxu0 %v395
        %439 = vmatprep.subr.mxu0 0.0
        %440 = vmatpush2.msra.mxu0 0.0
        %441 = vmatprep.subr.mxu0 0.0
        %442 = vmatpush2.msra.mxu0 0.0
        %443 = vmatprep.subr.mxu0 0.0
        %444 = vmatpush2.msra.mxu0 0.0
        %445 = vmatprep.subr.mxu0 0.0
        %446 = vmatpush2.msra.mxu0 0.0
        %447 = vmatprep.subr.mxu0 0.0
        %448 = vmatpush2.msra.mxu0 0.0
        %449 = vmatprep.subr.mxu0 0.0
        %450 = vmatpush2.msra.mxu0 0.0
        %451 = vmatprep.subr.mxu0 0.0
        %452 = vmatpush2.msra.mxu0 0.0
        %453 = vmatprep.subr.mxu0 0.0
        %454 = vmatpush2.msra.mxu0 0.0
        %455 = vmatprep.subr.mxu0 0.0
        %456 = vmatpush2.msra.mxu0 0.0
        %457 = vmatprep.subr.mxu0 0.0
        %458 = vmatpush2.msra.mxu0 0.0
        %459 = vmatprep.subr.mxu0 0.0
        %460 = vmatpush2.msra.mxu0 0.0
        %461 = vmatprep.subr.mxu0 0.0
        %462 = vmatpush2.msra.mxu0 0.0
        %463 = vmatprep.subr.mxu0 0.0
        %464 = vmatpush2.msra.mxu0 0.0
        %465 = vmatprep.subr.mxu0 0.0
        %466 = vmatpush2.msra.mxu0 0.0
        %467 = vmatprep.subr.mxu0 0.0
        %468 = vmatpush2.msra.mxu0 0.0
        %469 = vmatprep.subr.mxu0 0.0
        %470 = vmatpush2.msra.mxu0 0.0
        %471 = vmatprep.mubr.f32.mxu0 0.0
        %472 = vmatmul.mubr.f32.gmra.mxu0 %v402
        %v473 = vpop.f32.mrf.mxu0
        %v474 = vadd.f32 0.0, %v473
        %v475 = vpop.f32.mrf.mxu0
        %476 = vmatprep.mubr.f32.mxu0 0.0
        %477 = vmatmul.mubr.f32.gmra.mxu0 %v405
        %v478 = vpop.f32.mrf.mxu0
        %v479 = vadd.f32 0.0, %v478
        %v480 = vpop.f32.mrf.mxu0
        %481 = vdwg.mxu0
        %482 = vst [vmem:[%s188] sm:$0xff] %v474
        %483 = vst [vmem:[%s188 + $0x8] sm:$0xff] %v479
        %s484 = sand.u32 %s89, 1
        %s485 = scalar_lea.sflag [#allocation5], %s484
        %s486 = sand.u32 %s89, 1
        %s487 = smul.addr %s486, 16
        %s488 = scalar_lea.vmem [#allocation8], %s487
        // Predicated region
        $region37: #{tpu_custom_call.1} parent=27 // pred_check
          %p489 = pneg %p99
        $region38: #{tpu_custom_call.1} parent=27 // pred_check_branch
          %491 = sbr.rel (%p489) target = $region40
        $region39: #{tpu_custom_call.1} parent=27 // pred_region
          %s493 = ssub.s32 256, 256
          %494 = vsyncadd %s485, %s493
          %s495 = smul.addr %s24, 6
          %s496 = sadd.s32 %s25, %s495
          %s497 = smul.addr %s496, 128
          %s498 = scalar_lea.hbm %s2, %s497
          %s499 = sshll.u32 %s488, 4
          %s500 = int_to_ptr.vmem [resolvable:$true] %s499
          %505 = dma.vmem_to_hbm [thread:$0]  %s500, 256, %s498, %s485, 128, 384, 8
        $region40: #{tpu_custom_call.1} parent=27 // pred_fallthru
          _
      $region28: #{tpu_custom_call.1} parent=5 // pred_fallthru
        _
      %p506 = scmp.le.s32.totalorder 2, %s15
      // Predicated region
      $region41: #{tpu_custom_call.1} parent=5 // pred_check
        %p507 = pneg %p506
      $region42: #{tpu_custom_call.1} parent=5 // pred_check_branch
        %509 = sbr.rel (%p507) target = $region44
      $region43: #{tpu_custom_call.1} parent=5 // pred_region
        %s510 = ssub.s32 %s15, 2
        // Predicated region
        $region45: #{tpu_custom_call.1} parent=43 // pred_check
          %p511 = pneg %p105
        $region46: #{tpu_custom_call.1} parent=43 // pred_check_branch
          %513 = sbr.rel (%p511) target = $region48
        $region47: #{tpu_custom_call.1} parent=43 // pred_region
          %s514 = sand.u32 %s90, 1
          %s515 = scalar_lea.sflag [#allocation5], %s514
          %s516 = sand.u32 %s90, 1
          %s517 = smul.addr %s516, 16
          %s518 = scalar_lea.vmem [#allocation8], %s517
          %519 = dma.done %s515, 256
        $region48: #{tpu_custom_call.1} parent=43 // pred_fallthru
          _
      $region44: #{tpu_custom_call.1} parent=5 // pred_fallthru
        _
    $region6: #{tpu_custom_call.1} parent=1 // loop_footer
      %s19 = sadd.s32 1, %s15
    $region7: #{tpu_custom_call.1} parent=1 // loop_footer_branch
      %14 = sbr.rel target = $region3
    $region8: #{tpu_custom_call.1} parent=1 // loop_exit
      _
    %520 = vsyncpa [#allocation4], 1
    %s521 = scalar_lea.sflag [#allocation4], 1
    %522 = vsyncpa %s521, 1
    %523 = vsyncpa [#allocation7], 1
    %524 = vsyncpa [#allocation5], 1
    %s525 = scalar_lea.sflag [#allocation5], 1
    %526 = vsyncpa %s525, 1

</llo_original>
